<compile_context>
chip_gen: v7x
topology: tpu7x:2x2x1
jax: 0.10.0
libtpu: 0.0.40
codegen_flags: <defaults>
</compile_context>

<pallas_src>
import functools

import jax
import jax.numpy as jnp
from jax.experimental import pallas as pl

BN_EPS = 1e-5

# Logical dims
K_IN = 90        # z features
H = 180          # hidden per branch
OUT = 371        # output per branch
# Lane-padded dims
K_PAD = 128      # 90  -> 128
H_PAD = 256      # 180 -> 256  (fused hidden = 512)
OUT_PAD = 384    # 371 -> 384  (fused output = 768)


def _decoder_kernel(z_ref, w1_ref, b1_ref, w2_ref, b2_ref, out_ref):
    # z:  (B, 128)  f32
    # w1: (128, 512) bf16   b1: (1, 512) f32     (BN already folded in)
    # w2: (512, 768) bf16   b2: (1, 768) f32     (block-diagonal over the two branches)
    # out:(B, 768)  f32     [:, :384] = mu (padded), [:, 384:] = tanh(logcovar) (padded)
    z = z_ref[...]

    w1 = w1_ref[...].astype(jnp.float32)
    h = jnp.dot(z, w1, preferred_element_type=jnp.float32) + b1_ref[...]
    h = jnp.maximum(h, 0.0)          # ReLU; Dropout(0.1) is identity in eval mode

    w2 = w2_ref[...].astype(jnp.float32)
    out = jnp.dot(h, w2, preferred_element_type=jnp.float32) + b2_ref[...]

    # Apply Tanh only to the logcovar half (lanes >= 384); one full lane-dense store.
    col = jax.lax.broadcasted_iota(jnp.int32, out.shape, 1)
    out_ref[...] = jnp.where(col >= OUT_PAD, jnp.tanh(out), out).astype(out_ref.dtype)


def fuse_params(params):
    """Fold eval-mode BatchNorm into Linear1 and build fused, lane-padded,
    block-diagonal parameters. Weights are stored as bf16; biases stay f32."""

    def fold(w1, b1, gamma, beta, mean, var):
        scale = gamma * jax.lax.rsqrt(var + BN_EPS)          # (1, 180)
        return w1 * scale, (b1 - mean) * scale + beta

    w1m, b1m = fold(params["w1_mu"], params["b1_mu"], params["g_mu"],
                    params["be_mu"], params["rm_mu"], params["rv_mu"])
    w1l, b1l = fold(params["w1_lc"], params["b1_lc"], params["g_lc"],
                    params["be_lc"], params["rm_lc"], params["rv_lc"])

    w1cat = jnp.zeros((K_PAD, 2 * H_PAD), jnp.float32)
    w1cat = w1cat.at[:K_IN, :H].set(w1m)
    w1cat = w1cat.at[:K_IN, H_PAD:H_PAD + H].set(w1l)
    b1cat = jnp.zeros((1, 2 * H_PAD), jnp.float32)
    b1cat = b1cat.at[:, :H].set(b1m)
    b1cat = b1cat.at[:, H_PAD:H_PAD + H].set(b1l)

    w2cat = jnp.zeros((2 * H_PAD, 2 * OUT_PAD), jnp.float32)
    w2cat = w2cat.at[:H, :OUT].set(params["w2_mu"])
    w2cat = w2cat.at[H_PAD:H_PAD + H, OUT_PAD:OUT_PAD + OUT].set(params["w2_lc"])
    b2cat = jnp.zeros((1, 2 * OUT_PAD), jnp.float32)
    b2cat = b2cat.at[:, :OUT].set(params["b2_mu"])
    b2cat = b2cat.at[:, OUT_PAD:OUT_PAD + OUT].set(params["b2_lc"])

    return (w1cat.astype(jnp.bfloat16), b1cat,
            w2cat.astype(jnp.bfloat16), b2cat)


@jax.jit
def decoder_forward(z, fused):
    """z: (B, 90) f32. fused: output of fuse_params. Returns (mu, logcovar)."""
    w1cat, b1cat, w2cat, b2cat = fused
    B = z.shape[0]
    z_pad = jnp.pad(z, ((0, 0), (0, K_PAD - z.shape[1])))

    out = pl.pallas_call(
        _decoder_kernel,
        grid=(),
        in_specs=[
            pl.BlockSpec(z_pad.shape, lambda: (0, 0)),
            pl.BlockSpec(w1cat.shape, lambda: (0, 0)),
            pl.BlockSpec(b1cat.shape, lambda: (0, 0)),
            pl.BlockSpec(w2cat.shape, lambda: (0, 0)),
            pl.BlockSpec(b2cat.shape, lambda: (0, 0)),
        ],
        out_specs=pl.BlockSpec((B, 2 * OUT_PAD), lambda: (0, 0)),
        out_shape=jax.ShapeDtypeStruct((B, 2 * OUT_PAD), jnp.float32),
    )(z_pad, w1cat, b1cat, w2cat, b2cat)

    mu = out[:, :OUT]
    logcovar = out[:, OUT_PAD:OUT_PAD + OUT]
    return mu, logcovar


def init_params(key):
    """Deterministic synthetic parameters matching the module's shapes."""
    ks = jax.random.split(key, 16)

    def lin(kw, kb, fan_in, fan_out):
        bound = 1.0 / jnp.sqrt(fan_in)
        w = jax.random.uniform(kw, (fan_in, fan_out), jnp.float32, -bound, bound)
        b = jax.random.uniform(kb, (1, fan_out), jnp.float32, -bound, bound)
        return w, b

    p = {}
    # mu branch
    p["w1_mu"], p["b1_mu"] = lin(ks[0], ks[1], 90, 180)
    p["g_mu"] = 1.0 + 0.1 * jax.random.normal(ks[2], (1, 180), jnp.float32)
    p["be_mu"] = 0.1 * jax.random.normal(ks[3], (1, 180), jnp.float32)
    p["rm_mu"] = 0.05 * jax.random.normal(ks[4], (1, 180), jnp.float32)
    p["rv_mu"] = 1.0 + 0.1 * jax.nn.softplus(jax.random.normal(ks[5], (1, 180), jnp.float32))
    p["w2_mu"], p["b2_mu"] = lin(ks[6], ks[7], 180, 371)
    # logcovar branch
    p["w1_lc"], p["b1_lc"] = lin(ks[8], ks[9], 90, 180)
    p["g_lc"] = 1.0 + 0.1 * jax.random.normal(ks[10], (1, 180), jnp.float32)
    p["be_lc"] = 0.1 * jax.random.normal(ks[11], (1, 180), jnp.float32)
    p["rm_lc"] = 0.05 * jax.random.normal(ks[12], (1, 180), jnp.float32)
    p["rv_lc"] = 1.0 + 0.1 * jax.nn.softplus(jax.random.normal(ks[13], (1, 180), jnp.float32))
    p["w2_lc"], p["b2_lc"] = lin(ks[14], ks[15], 180, 371)
    return p


def decoder_forward_fused_ref(z, fused):
    """Exact pure-JAX reference for what the kernel computes (same fused bf16 weights)."""
    w1cat, b1cat, w2cat, b2cat = fused
    z_pad = jnp.pad(z, ((0, 0), (0, K_PAD - z.shape[1])))
    hp = jax.lax.Precision.HIGHEST
    h = jnp.maximum(jnp.dot(z_pad, w1cat.astype(jnp.float32), precision=hp) + b1cat, 0.0)
    out = jnp.dot(h, w2cat.astype(jnp.float32), precision=hp) + b2cat
    return out[:, :OUT], jnp.tanh(out[:, OUT_PAD:OUT_PAD + OUT])


def decoder_forward_ref(z, p):
    """Unfused f32 eval-mode reference of the original module (semantic check)."""
    def branch(w1, b1, g, be, rm, rv, w2, b2):
        h = z @ w1 + b1
        h = (h - rm) / jnp.sqrt(rv + BN_EPS) * g + be
        h = jnp.maximum(h, 0.0)
        return h @ w2 + b2

    mu = branch(p["w1_mu"], p["b1_mu"], p["g_mu"], p["be_mu"],
                p["rm_mu"], p["rv_mu"], p["w2_mu"], p["b2_mu"])
    lc = jnp.tanh(branch(p["w1_lc"], p["b1_lc"], p["g_lc"], p["be_lc"],
                         p["rm_lc"], p["rv_lc"], p["w2_lc"], p["b2_lc"]))
    return mu, lc


if __name__ == "__main__":
    key = jax.random.PRNGKey(0)
    kz, kp = jax.random.split(key)
    B = 8
    z = jax.random.normal(kz, (B, 90), jnp.float32)
    params = init_params(kp)
    fused = fuse_params(params)

    mu, logcovar = decoder_forward(z, fused)
    jax.block_until_ready((mu, logcovar))

    assert mu.shape == (B, 371) and logcovar.shape == (B, 371)

    # Tight check: kernel vs. identical-math (fused, bf16-quantized) reference.
    mu_fr, lc_fr = decoder_forward_fused_ref(z, fused)
    assert jnp.allclose(mu, mu_fr, atol=5e-4, rtol=5e-4)
    assert jnp.allclose(logcovar, lc_fr, atol=5e-4, rtol=5e-4)

    # Semantic check: kernel vs. original unfused f32 eval-mode module
    # (difference bounded by bf16 weight quantization).
    mu_ref, lc_ref = decoder_forward_ref(z, params)
    assert jnp.allclose(mu, mu_ref, atol=5e-2, rtol=5e-2)
    assert jnp.allclose(logcovar, lc_ref, atol=5e-2, rtol=5e-2)

    print("KERNEL_OK")
</pallas_src>

<mosaic_0001>
module attributes {stable_mosaic.version = 11 : i64} {
  func.func @_decoder_kernel(%arg0: memref<8x128xf32, #tpu.memory_space<vmem>>, %arg1: memref<128x512xbf16, #tpu.memory_space<vmem>>, %arg2: memref<1x512xf32, #tpu.memory_space<vmem>>, %arg3: memref<512x768xbf16, #tpu.memory_space<vmem>>, %arg4: memref<1x768xf32, #tpu.memory_space<vmem>>, %arg5: memref<8x768xf32, #tpu.memory_space<vmem>>) attributes {dimension_semantics = [], scalar_prefetch = 0 : i64, scratch_operands = 0 : i64, tpu.core_type = #tpu.core_type<tc>} {
    %c0 = arith.constant 0 : index
    %c0_0 = arith.constant 0 : index
    %0 = vector.load %arg0[%c0, %c0_0] : memref<8x128xf32, #tpu.memory_space<vmem>>, vector<8x128xf32>
    %c0_1 = arith.constant 0 : index
    %c0_2 = arith.constant 0 : index
    %1 = vector.load %arg1[%c0_1, %c0_2] : memref<128x512xbf16, #tpu.memory_space<vmem>>, vector<128x512xbf16>
    %2 = arith.extf %1 : vector<128x512xbf16> to vector<128x512xf32>
    %cst = arith.constant dense<0.000000e+00> : vector<8x512xf32>
    %3 = tpu.matmul %0, %2, %cst {dimension_numbers = #tpu.dot_dimension_numbers<[1], [0], [0], [1], [0, 0, 1, 1], [], []>} : vector<8x128xf32>, vector<128x512xf32>, vector<8x512xf32> -> vector<8x512xf32>
    %c0_3 = arith.constant 0 : index
    %c0_4 = arith.constant 0 : index
    %4 = vector.load %arg2[%c0_3, %c0_4] : memref<1x512xf32, #tpu.memory_space<vmem>>, vector<1x512xf32>
    %5 = vector.broadcast %4 : vector<1x512xf32> to vector<8x512xf32>
    %6 = arith.addf %3, %5 : vector<8x512xf32>
    %cst_5 = arith.constant 0.000000e+00 : f32
    %7 = vector.broadcast %cst_5 : f32 to vector<8x512xf32>
    %8 = arith.maximumf %6, %7 : vector<8x512xf32>
    %c0_6 = arith.constant 0 : index
    %c0_7 = arith.constant 0 : index
    %9 = vector.load %arg3[%c0_6, %c0_7] : memref<512x768xbf16, #tpu.memory_space<vmem>>, vector<512x768xbf16>
    %10 = arith.extf %9 : vector<512x768xbf16> to vector<512x768xf32>
    %cst_8 = arith.constant dense<0.000000e+00> : vector<8x768xf32>
    %11 = tpu.matmul %8, %10, %cst_8 {dimension_numbers = #tpu.dot_dimension_numbers<[1], [0], [0], [1], [0, 0, 1, 1], [], []>} : vector<8x512xf32>, vector<512x768xf32>, vector<8x768xf32> -> vector<8x768xf32>
    %c0_9 = arith.constant 0 : index
    %c0_10 = arith.constant 0 : index
    %12 = vector.load %arg4[%c0_9, %c0_10] : memref<1x768xf32, #tpu.memory_space<vmem>>, vector<1x768xf32>
    %13 = vector.broadcast %12 : vector<1x768xf32> to vector<8x768xf32>
    %14 = arith.addf %11, %13 : vector<8x768xf32>
    %15 = tpu.iota {dimensions = array<i32: 1>} : vector<8x768xi32>
    %c384_i32 = arith.constant 384 : i32
    %16 = vector.broadcast %c384_i32 : i32 to vector<8x768xi32>
    %17 = arith.cmpi sge, %15, %16 : vector<8x768xi32>
    %18 = math.tanh %14 : vector<8x768xf32>
    %19 = arith.select %17, %18, %14 : vector<8x768xi1>, vector<8x768xf32>
    %c0_11 = arith.constant 0 : index
    %c0_12 = arith.constant 0 : index
    %20 = vector.load %arg5[%c0_11, %c0_12] : memref<8x768xf32, #tpu.memory_space<vmem>>, vector<8x768xf32>
    tpu.vector_store %arg5[%c0_11, %c0_12], %19 {strides = array<i32>} : memref<8x768xf32, #tpu.memory_space<vmem>>, vector<8x768xf32>,
    return
  }
}

</mosaic_0001>

<llo_original>
// kernel: decoder_forward.1
$region0: #{decoder_forward.1}
  #allocation0 [shape = 'u32[]', space=smem, size = 0x4, offset = 0x4, fixed_abs, tag = 'smem constant byte address 0x4 - core index']
  #allocation1 [shape = 'u32[144,128]{1,0:T(1,128)}', space=vmem, size = 0x12000, scoped, tag = 'internal scratch']
  %s0 = inlined_call_operand.vmem [shape: f32[8,128], index: 0, kind: input, shape index: {}]
  %s1 = inlined_call_operand.hbm [shape: bf16[128,512], index: 1, kind: input, shape index: {}]
  %s2 = inlined_call_operand.vmem [shape: f32[1,512], index: 2, kind: input, shape index: {}]
  %s3 = inlined_call_operand.hbm [shape: bf16[512,768], index: 3, kind: input, shape index: {}]
  %s4 = inlined_call_operand.vmem [shape: f32[1,768], index: 4, kind: input, shape index: {}]
  %s5 = inlined_call_operand.vmem [shape: f32[8,768], index: 5, kind: output, shape index: {}]
  %s6 = sld [smem:[#allocation0]]
  $region38: #{decoder_forward.1} parent=0
    _
  %s8 = ssub.s32 1, %s6
  %s9 = scalar_select 0, %s8, %s6
  $region1: #{decoder_forward.1} parent=0
    #allocation2 [shape = 'u8[131072]{0}', space=vmem, size = 0x20000, scoped, tag = 'input window, operand 1, single buffered']
    #allocation3 [shape = 's32[1]{0}', space=sflag, size = 0x4, scoped, tag = 'scoped memory for decoder_forward.1']
    #allocation4 [shape = 'u8[786432]{0}', space=vmem, size = 0xc0000, scoped, tag = 'input window, operand 3, single buffered']
    #allocation5 [shape = 's32[1]{0}', space=sflag, size = 0x4, scoped, tag = 'scoped memory for decoder_forward.1']
    %10 = vsyncpa [#allocation3], 0
    %11 = vsyncpa [#allocation5], 0
    // Predicated region
    $region2: #{decoder_forward.1} parent=1 // pred_check
      _
    $region3: #{decoder_forward.1} parent=1 // pred_check_branch
      %13 = sbr.rel (0) target = $region5
    $region4: #{decoder_forward.1} parent=1 // pred_region
      _
    $region5: #{decoder_forward.1} parent=1 // pred_fallthru
      _
    // Predicated region
    $region6: #{decoder_forward.1} parent=1 // pred_check
      _
    $region7: #{decoder_forward.1} parent=1 // pred_check_branch
      %15 = sbr.rel (0) target = $region9
    $region8: #{decoder_forward.1} parent=1 // pred_region
      %s17 = ssub.s32 4096, 4096
      %18 = vsyncadd [#allocation3], %s17
      %s19 = sshll.u32 [#allocation2], 4
      %s20 = int_to_ptr.vmem [resolvable:$true] %s19
      %25 = dma.hbm_to_vmem [thread:$0]  %s1, 4096, %s20, [#allocation3], 256, 256, 16
    $region9: #{decoder_forward.1} parent=1 // pred_fallthru
      _
    // Predicated region
    $region10: #{decoder_forward.1} parent=1 // pred_check
      _
    $region11: #{decoder_forward.1} parent=1 // pred_check_branch
      %27 = sbr.rel (0) target = $region13
    $region12: #{decoder_forward.1} parent=1 // pred_region
      _
    $region13: #{decoder_forward.1} parent=1 // pred_fallthru
      _
    // Predicated region
    $region14: #{decoder_forward.1} parent=1 // pred_check
      _
    $region15: #{decoder_forward.1} parent=1 // pred_check_branch
      %29 = sbr.rel (0) target = $region17
    $region16: #{decoder_forward.1} parent=1 // pred_region
      %s31 = ssub.s32 24576, 24576
      %32 = vsyncadd [#allocation5], %s31
      %s33 = sshll.u32 [#allocation4], 4
      %s34 = int_to_ptr.vmem [resolvable:$true] %s33
      %39 = dma.hbm_to_vmem [thread:$0]  %s3, 24576, %s34, [#allocation5], 384, 384, 24
    $region17: #{decoder_forward.1} parent=1 // pred_fallthru
      _
    // Predicated region
    $region18: #{decoder_forward.1} parent=1 // pred_check
      _
    $region19: #{decoder_forward.1} parent=1 // pred_check_branch
      %41 = sbr.rel (0) target = $region21
    $region20: #{decoder_forward.1} parent=1 // pred_region
      _
    $region21: #{decoder_forward.1} parent=1 // pred_fallthru
      _
    // Predicated region
    $region22: #{decoder_forward.1} parent=1 // pred_check
      _
    $region23: #{decoder_forward.1} parent=1 // pred_check_branch
      %43 = sbr.rel (0) target = $region25
    $region24: #{decoder_forward.1} parent=1 // pred_region
      %44 = dma.done [#allocation3], 4096
    $region25: #{decoder_forward.1} parent=1 // pred_fallthru
      _
    // Predicated region
    $region26: #{decoder_forward.1} parent=1 // pred_check
      _
    $region27: #{decoder_forward.1} parent=1 // pred_check_branch
      %46 = sbr.rel (0) target = $region29
    $region28: #{decoder_forward.1} parent=1 // pred_region
      %47 = dma.done [#allocation5], 24576
    $region29: #{decoder_forward.1} parent=1 // pred_fallthru
      _
    %v48 = vld [vmem:[%s0] sm:$0xff]
    %v49 = vld [vmem:[#allocation2] sm:$0xff]
    %v50 = vld [vmem:[#allocation2 + $0x8] sm:$0xff]
    %v51 = vld [vmem:[#allocation2 + $0x10] sm:$0xff]
    %v52 = vld [vmem:[#allocation2 + $0x18] sm:$0xff]
    %v53 = vld [vmem:[#allocation2 + $0x20] sm:$0xff]
    %v54 = vld [vmem:[#allocation2 + $0x28] sm:$0xff]
    %v55 = vld [vmem:[#allocation2 + $0x30] sm:$0xff]
    %v56 = vld [vmem:[#allocation2 + $0x38] sm:$0xff]
    %v57 = vld [vmem:[#allocation2 + $0x40] sm:$0xff]
    %v58 = vld [vmem:[#allocation2 + $0x48] sm:$0xff]
    %v59 = vld [vmem:[#allocation2 + $0x50] sm:$0xff]
    %v60 = vld [vmem:[#allocation2 + $0x58] sm:$0xff]
    %v61 = vld [vmem:[#allocation2 + $0x60] sm:$0xff]
    %v62 = vld [vmem:[#allocation2 + $0x68] sm:$0xff]
    %v63 = vld [vmem:[#allocation2 + $0x70] sm:$0xff]
    %v64 = vld [vmem:[#allocation2 + $0x78] sm:$0xff]
    %v65 = vld [vmem:[#allocation2 + $0x80] sm:$0xff]
    %v66 = vld [vmem:[#allocation2 + $0x88] sm:$0xff]
    %v67 = vld [vmem:[#allocation2 + $0x90] sm:$0xff]
    %v68 = vld [vmem:[#allocation2 + $0x98] sm:$0xff]
    %v69 = vld [vmem:[#allocation2 + $0xa0] sm:$0xff]
    %v70 = vld [vmem:[#allocation2 + $0xa8] sm:$0xff]
    %v71 = vld [vmem:[#allocation2 + $0xb0] sm:$0xff]
    %v72 = vld [vmem:[#allocation2 + $0xb8] sm:$0xff]
    %v73 = vld [vmem:[#allocation2 + $0xc0] sm:$0xff]
    %v74 = vld [vmem:[#allocation2 + $0xc8] sm:$0xff]
    %v75 = vld [vmem:[#allocation2 + $0xd0] sm:$0xff]
    %v76 = vld [vmem:[#allocation2 + $0xd8] sm:$0xff]
    %v77 = vld [vmem:[#allocation2 + $0xe0] sm:$0xff]
    %v78 = vld [vmem:[#allocation2 + $0xe8] sm:$0xff]
    %v79 = vld [vmem:[#allocation2 + $0xf0] sm:$0xff]
    %v80 = vld [vmem:[#allocation2 + $0xf8] sm:$0xff]
    %v81 = vunpack.c.l.bf16 %v49
    %v82 = vunpack.c.h.bf16 %v49
    %v83 = vunpack.c.l.bf16 %v50
    %v84 = vunpack.c.h.bf16 %v50
    %v85 = vunpack.c.l.bf16 %v51
    %v86 = vunpack.c.h.bf16 %v51
    %v87 = vunpack.c.l.bf16 %v52
    %v88 = vunpack.c.h.bf16 %v52
    %v89 = vunpack.c.l.bf16 %v53
    %v90 = vunpack.c.h.bf16 %v53
    %v91 = vunpack.c.l.bf16 %v54
    %v92 = vunpack.c.h.bf16 %v54
    %v93 = vunpack.c.l.bf16 %v55
    %v94 = vunpack.c.h.bf16 %v55
    %v95 = vunpack.c.l.bf16 %v56
    %v96 = vunpack.c.h.bf16 %v56
    %v97 = vunpack.c.l.bf16 %v57
    %v98 = vunpack.c.h.bf16 %v57
    %v99 = vunpack.c.l.bf16 %v58
    %v100 = vunpack.c.h.bf16 %v58
    %v101 = vunpack.c.l.bf16 %v59
    %v102 = vunpack.c.h.bf16 %v59
    %v103 = vunpack.c.l.bf16 %v60
    %v104 = vunpack.c.h.bf16 %v60
    %v105 = vunpack.c.l.bf16 %v61
    %v106 = vunpack.c.h.bf16 %v61
    %v107 = vunpack.c.l.bf16 %v62
    %v108 = vunpack.c.h.bf16 %v62
    %v109 = vunpack.c.l.bf16 %v63
    %v110 = vunpack.c.h.bf16 %v63
    %v111 = vunpack.c.l.bf16 %v64
    %v112 = vunpack.c.h.bf16 %v64
    %v113 = vunpack.c.l.bf16 %v65
    %v114 = vunpack.c.h.bf16 %v65
    %v115 = vunpack.c.l.bf16 %v66
    %v116 = vunpack.c.h.bf16 %v66
    %v117 = vunpack.c.l.bf16 %v67
    %v118 = vunpack.c.h.bf16 %v67
    %v119 = vunpack.c.l.bf16 %v68
    %v120 = vunpack.c.h.bf16 %v68
    %v121 = vunpack.c.l.bf16 %v69
    %v122 = vunpack.c.h.bf16 %v69
    %v123 = vunpack.c.l.bf16 %v70
    %v124 = vunpack.c.h.bf16 %v70
    %v125 = vunpack.c.l.bf16 %v71
    %v126 = vunpack.c.h.bf16 %v71
    %v127 = vunpack.c.l.bf16 %v72
    %v128 = vunpack.c.h.bf16 %v72
    %v129 = vunpack.c.l.bf16 %v73
    %v130 = vunpack.c.h.bf16 %v73
    %v131 = vunpack.c.l.bf16 %v74
    %v132 = vunpack.c.h.bf16 %v74
    %v133 = vunpack.c.l.bf16 %v75
    %v134 = vunpack.c.h.bf16 %v75
    %v135 = vunpack.c.l.bf16 %v76
    %v136 = vunpack.c.h.bf16 %v76
    %v137 = vunpack.c.l.bf16 %v77
    %v138 = vunpack.c.h.bf16 %v77
    %v139 = vunpack.c.l.bf16 %v78
    %v140 = vunpack.c.h.bf16 %v78
    %v141 = vunpack.c.l.bf16 %v79
    %v142 = vunpack.c.h.bf16 %v79
    %v143 = vunpack.c.l.bf16 %v80
    %v144 = vunpack.c.h.bf16 %v80
    %v145 = vld [vmem:[%s2] sm:$0xf]
    %v147 = vlaneseq
    %v148 = vshrl.u32 %v147, 7
    %v149 = vsub.s32 0, %v148
    %v150 = vrot.slane %v145, %v149
    %v151 = vlaneseq
    %v152 = vshrl.u32 %v151, 7
    %v153 = vsub.s32 1, %v152
    %v154 = vrot.slane %v145, %v153
    %v155 = vlaneseq
    %v156 = vshrl.u32 %v155, 7
    %v157 = vsub.s32 2, %v156
    %v158 = vrot.slane %v145, %v157
    %v159 = vlaneseq
    %v160 = vshrl.u32 %v159, 7
    %v161 = vsub.s32 3, %v160
    %v162 = vrot.slane %v145, %v161
    %167 = vmatprep.subr.mxu0 %v82
    %168 = vmatpush1.msra.mxu0 %v81
    %169 = vmatprep.subr.mxu0 %v86
    %170 = vmatpush1.msra.mxu0 %v85
    %171 = vmatprep.subr.mxu0 %v90
    %172 = vmatpush1.msra.mxu0 %v89
    %173 = vmatprep.subr.mxu0 %v94
    %174 = vmatpush1.msra.mxu0 %v93
    %175 = vmatprep.subr.mxu0 %v98
    %176 = vmatpush1.msra.mxu0 %v97
    %177 = vmatprep.subr.mxu0 %v102
    %178 = vmatpush1.msra.mxu0 %v101
    %179 = vmatprep.subr.mxu0 %v106
    %180 = vmatpush1.msra.mxu0 %v105
    %181 = vmatprep.subr.mxu0 %v110
    %182 = vmatpush1.msra.mxu0 %v109
    %183 = vmatprep.subr.mxu0 %v114
    %184 = vmatpush1.msra.mxu0 %v113
    %185 = vmatprep.subr.mxu0 %v118
    %186 = vmatpush1.msra.mxu0 %v117
    %187 = vmatprep.subr.mxu0 %v122
    %188 = vmatpush1.msra.mxu0 %v121
    %189 = vmatprep.subr.mxu0 %v126
    %190 = vmatpush1.msra.mxu0 %v125
    %191 = vmatprep.subr.mxu0 %v130
    %192 = vmatpush1.msra.mxu0 %v129
    %193 = vmatprep.subr.mxu0 %v134
    %194 = vmatpush1.msra.mxu0 %v133
    %195 = vmatprep.subr.mxu0 %v138
    %196 = vmatpush1.msra.mxu0 %v137
    %197 = vmatprep.subr.mxu0 %v142
    %198 = vmatpush1.msra.mxu0 %v141
    %199 = vmatprep.subr.mxu0 0.0
    %200 = vmatpush1.msra.mxu0 0.0
    %201 = vmatprep.subr.mxu0 0.0
    %202 = vmatpush1.msra.mxu0 0.0
    %203 = vmatprep.subr.mxu0 0.0
    %204 = vmatpush1.msra.mxu0 0.0
    %205 = vmatprep.subr.mxu0 0.0
    %206 = vmatpush1.msra.mxu0 0.0
    %207 = vmatprep.subr.mxu0 0.0
    %208 = vmatpush1.msra.mxu0 0.0
    %209 = vmatprep.subr.mxu0 0.0
    %210 = vmatpush1.msra.mxu0 0.0
    %211 = vmatprep.subr.mxu0 0.0
    %212 = vmatpush1.msra.mxu0 0.0
    %213 = vmatprep.subr.mxu0 0.0
    %214 = vmatpush1.msra.mxu0 0.0
    %215 = vmatprep.subr.mxu0 0.0
    %216 = vmatpush1.msra.mxu0 0.0
    %217 = vmatprep.subr.mxu0 0.0
    %218 = vmatpush1.msra.mxu0 0.0
    %219 = vmatprep.subr.mxu0 0.0
    %220 = vmatpush1.msra.mxu0 0.0
    %221 = vmatprep.subr.mxu0 0.0
    %222 = vmatpush1.msra.mxu0 0.0
    %223 = vmatprep.subr.mxu0 0.0
    %224 = vmatpush1.msra.mxu0 0.0
    %225 = vmatprep.subr.mxu0 0.0
    %226 = vmatpush1.msra.mxu0 0.0
    %227 = vmatprep.subr.mxu0 0.0
    %228 = vmatpush1.msra.mxu0 0.0
    %229 = vmatprep.subr.mxu0 0.0
    %230 = vmatpush1.msra.mxu0 0.0
    %231 = vmatprep.mubr.f32.mxu0 0.0
    %232 = vmatmul.mubr.f32.gmra.mrb[0].mxu0 %v48
    %v233 = vpop.f32.mrb[0].mxu0
    %v234 = vadd.f32 %v150, %v233
    %v235 = vpop.f32.mrb[0].mxu0
    %v236 = vadd.f32 %v154, %v235
    %237 = vdwg.mxu0
    %238 = vmatprep.subr.mxu0 %v84
    %239 = vmatpush1.msra.mxu0 %v83
    %240 = vmatprep.subr.mxu0 %v88
    %241 = vmatpush1.msra.mxu0 %v87
    %242 = vmatprep.subr.mxu0 %v92
    %243 = vmatpush1.msra.mxu0 %v91
    %244 = vmatprep.subr.mxu0 %v96
    %245 = vmatpush1.msra.mxu0 %v95
    %246 = vmatprep.subr.mxu0 %v100
    %247 = vmatpush1.msra.mxu0 %v99
    %248 = vmatprep.subr.mxu0 %v104
    %249 = vmatpush1.msra.mxu0 %v103
    %250 = vmatprep.subr.mxu0 %v108
    %251 = vmatpush1.msra.mxu0 %v107
    %252 = vmatprep.subr.mxu0 %v112
    %253 = vmatpush1.msra.mxu0 %v111
    %254 = vmatprep.subr.mxu0 %v116
    %255 = vmatpush1.msra.mxu0 %v115
    %256 = vmatprep.subr.mxu0 %v120
    %257 = vmatpush1.msra.mxu0 %v119
    %258 = vmatprep.subr.mxu0 %v124
    %259 = vmatpush1.msra.mxu0 %v123
    %260 = vmatprep.subr.mxu0 %v128
    %261 = vmatpush1.msra.mxu0 %v127
    %262 = vmatprep.subr.mxu0 %v132
    %263 = vmatpush1.msra.mxu0 %v131
    %264 = vmatprep.subr.mxu0 %v136
    %265 = vmatpush1.msra.mxu0 %v135
    %266 = vmatprep.subr.mxu0 %v140
    %267 = vmatpush1.msra.mxu0 %v139
    %268 = vmatprep.subr.mxu0 %v144
    %269 = vmatpush1.msra.mxu0 %v143
    %270 = vmatprep.subr.mxu0 0.0
    %271 = vmatpush1.msra.mxu0 0.0
    %272 = vmatprep.subr.mxu0 0.0
    %273 = vmatpush1.msra.mxu0 0.0
    %274 = vmatprep.subr.mxu0 0.0
    %275 = vmatpush1.msra.mxu0 0.0
    %276 = vmatprep.subr.mxu0 0.0
    %277 = vmatpush1.msra.mxu0 0.0
    %278 = vmatprep.subr.mxu0 0.0
    %279 = vmatpush1.msra.mxu0 0.0
    %280 = vmatprep.subr.mxu0 0.0
    %281 = vmatpush1.msra.mxu0 0.0
    %282 = vmatprep.subr.mxu0 0.0
    %283 = vmatpush1.msra.mxu0 0.0
    %284 = vmatprep.subr.mxu0 0.0
    %285 = vmatpush1.msra.mxu0 0.0
    %286 = vmatprep.subr.mxu0 0.0
    %287 = vmatpush1.msra.mxu0 0.0
    %288 = vmatprep.subr.mxu0 0.0
    %289 = vmatpush1.msra.mxu0 0.0
    %290 = vmatprep.subr.mxu0 0.0
    %291 = vmatpush1.msra.mxu0 0.0
    %292 = vmatprep.subr.mxu0 0.0
    %293 = vmatpush1.msra.mxu0 0.0
    %294 = vmatprep.subr.mxu0 0.0
    %295 = vmatpush1.msra.mxu0 0.0
    %296 = vmatprep.subr.mxu0 0.0
    %297 = vmatpush1.msra.mxu0 0.0
    %298 = vmatprep.subr.mxu0 0.0
    %299 = vmatpush1.msra.mxu0 0.0
    %300 = vmatprep.subr.mxu0 0.0
    %301 = vmatpush1.msra.mxu0 0.0
    %302 = vmatprep.mubr.f32.mxu0 0.0
    %303 = vmatmul.mubr.f32.gmra.mrb[0].mxu0 %v48
    %v304 = vpop.f32.mrb[0].mxu0
    %v305 = vadd.f32 %v158, %v304
    %v306 = vpop.f32.mrb[0].mxu0
    %v307 = vadd.f32 %v162, %v306
    %308 = vdwg.mxu0
    %v309 = vmax.f32 %v234, 0.0
    %v310 = vmax.f32 %v236, 0.0
    %v311 = vmax.f32 %v305, 0.0
    %v312 = vmax.f32 %v307, 0.0
    %v313 = vld [vmem:[#allocation4] sm:$0xff]
    %v314 = vld [vmem:[#allocation4 + $0x8] sm:$0xff]
    %v315 = vld [vmem:[#allocation4 + $0x10] sm:$0xff]
    %v316 = vld [vmem:[#allocation4 + $0x18] sm:$0xff]
    %v317 = vld [vmem:[#allocation4 + $0x20] sm:$0xff]
    %v318 = vld [vmem:[#allocation4 + $0x28] sm:$0xff]
    %v319 = vld [vmem:[#allocation4 + $0x30] sm:$0xff]
    %v320 = vld [vmem:[#allocation4 + $0x38] sm:$0xff]
    %v321 = vld [vmem:[#allocation4 + $0x40] sm:$0xff]
    %v322 = vld [vmem:[#allocation4 + $0x48] sm:$0xff]
    %v323 = vld [vmem:[#allocation4 + $0x50] sm:$0xff]
    %v324 = vld [vmem:[#allocation4 + $0x58] sm:$0xff]
    %v325 = vld [vmem:[#allocation4 + $0x60] sm:$0xff]
    %v326 = vld [vmem:[#allocation4 + $0x68] sm:$0xff]
    %v327 = vld [vmem:[#allocation4 + $0x70] sm:$0xff]
    %v328 = vld [vmem:[#allocation4 + $0x78] sm:$0xff]
    %v329 = vld [vmem:[#allocation4 + $0x80] sm:$0xff]
    %v330 = vld [vmem:[#allocation4 + $0x88] sm:$0xff]
    %v331 = vld [vmem:[#allocation4 + $0x90] sm:$0xff]
    %v332 = vld [vmem:[#allocation4 + $0x98] sm:$0xff]
    %v333 = vld [vmem:[#allocation4 + $0xa0] sm:$0xff]
    %v334 = vld [vmem:[#allocation4 + $0xa8] sm:$0xff]
    %v335 = vld [vmem:[#allocation4 + $0xb0] sm:$0xff]
    %v336 = vld [vmem:[#allocation4 + $0xb8] sm:$0xff]
    %v337 = vld [vmem:[#allocation4 + $0xc0] sm:$0xff]
    %v338 = vld [vmem:[#allocation4 + $0xc8] sm:$0xff]
    %v339 = vld [vmem:[#allocation4 + $0xd0] sm:$0xff]
    %v340 = vld [vmem:[#allocation4 + $0xd8] sm:$0xff]
    %v341 = vld [vmem:[#allocation4 + $0xe0] sm:$0xff]
    %v342 = vld [vmem:[#allocation4 + $0xe8] sm:$0xff]
    %v343 = vld [vmem:[#allocation4 + $0xf0] sm:$0xff]
    %v344 = vld [vmem:[#allocation4 + $0xf8] sm:$0xff]
    %v345 = vld [vmem:[#allocation4 + $0x100] sm:$0xff]
    %v346 = vld [vmem:[#allocation4 + $0x108] sm:$0xff]
    %v347 = vld [vmem:[#allocation4 + $0x110] sm:$0xff]
    %v348 = vld [vmem:[#allocation4 + $0x118] sm:$0xff]
    %v349 = vld [vmem:[#allocation4 + $0x120] sm:$0xff]
    %v350 = vld [vmem:[#allocation4 + $0x128] sm:$0xff]
    %v351 = vld [vmem:[#allocation4 + $0x130] sm:$0xff]
    %v352 = vld [vmem:[#allocation4 + $0x138] sm:$0xff]
    %v353 = vld [vmem:[#allocation4 + $0x140] sm:$0xff]
    %v354 = vld [vmem:[#allocation4 + $0x148] sm:$0xff]
    %v355 = vld [vmem:[#allocation4 + $0x150] sm:$0xff]
    %v356 = vld [vmem:[#allocation4 + $0x158] sm:$0xff]
    %v357 = vld [vmem:[#allocation4 + $0x160] sm:$0xff]
    %v358 = vld [vmem:[#allocation4 + $0x168] sm:$0xff]
    %v359 = vld [vmem:[#allocation4 + $0x170] sm:$0xff]
    %v360 = vld [vmem:[#allocation4 + $0x178] sm:$0xff]
    %v361 = vld [vmem:[#allocation4 + $0x180] sm:$0xff]
    %v362 = vld [vmem:[#allocation4 + $0x188] sm:$0xff]
    %v363 = vld [vmem:[#allocation4 + $0x190] sm:$0xff]
    %v364 = vld [vmem:[#allocation4 + $0x198] sm:$0xff]
    %v365 = vld [vmem:[#allocation4 + $0x1a0] sm:$0xff]
    %v366 = vld [vmem:[#allocation4 + $0x1a8] sm:$0xff]
    %v367 = vld [vmem:[#allocation4 + $0x1b0] sm:$0xff]
    %v368 = vld [vmem:[#allocation4 + $0x1b8] sm:$0xff]
    %v369 = vld [vmem:[#allocation4 + $0x1c0] sm:$0xff]
    %v370 = vld [vmem:[#allocation4 + $0x1c8] sm:$0xff]
    %v371 = vld [vmem:[#allocation4 + $0x1d0] sm:$0xff]
    %v372 = vld [vmem:[#allocation4 + $0x1d8] sm:$0xff]
    %v373 = vld [vmem:[#allocation4 + $0x1e0] sm:$0xff]
    %v374 = vld [vmem:[#allocation4 + $0x1e8] sm:$0xff]
    %v375 = vld [vmem:[#allocation4 + $0x1f0] sm:$0xff]
    %v376 = vld [vmem:[#allocation4 + $0x1f8] sm:$0xff]
    %v377 = vld [vmem:[#allocation4 + $0x200] sm:$0xff]
    %v378 = vld [vmem:[#allocation4 + $0x208] sm:$0xff]
    %v379 = vld [vmem:[#allocation4 + $0x210] sm:$0xff]
    %v380 = vld [vmem:[#allocation4 + $0x218] sm:$0xff]
    %v381 = vld [vmem:[#allocation4 + $0x220] sm:$0xff]
    %v382 = vld [vmem:[#allocation4 + $0x228] sm:$0xff]
    %v383 = vld [vmem:[#allocation4 + $0x230] sm:$0xff]
    %v384 = vld [vmem:[#allocation4 + $0x238] sm:$0xff]
    %v385 = vld [vmem:[#allocation4 + $0x240] sm:$0xff]
    %v386 = vld [vmem:[#allocation4 + $0x248] sm:$0xff]
    %v387 = vld [vmem:[#allocation4 + $0x250] sm:$0xff]
    %v388 = vld [vmem:[#allocation4 + $0x258] sm:$0xff]
    %v389 = vld [vmem:[#allocation4 + $0x260] sm:$0xff]
    %v390 = vld [vmem:[#allocation4 + $0x268] sm:$0xff]
    %v391 = vld [vmem:[#allocation4 + $0x270] sm:$0xff]
    %v392 = vld [vmem:[#allocation4 + $0x278] sm:$0xff]
    %v393 = vld [vmem:[#allocation4 + $0x280] sm:$0xff]
    %v394 = vld [vmem:[#allocation4 + $0x288] sm:$0xff]
    %v395 = vld [vmem:[#allocation4 + $0x290] sm:$0xff]
    %v396 = vld [vmem:[#allocation4 + $0x298] sm:$0xff]
    %v397 = vld [vmem:[#allocation4 + $0x2a0] sm:$0xff]
    %v398 = vld [vmem:[#allocation4 + $0x2a8] sm:$0xff]
    %v399 = vld [vmem:[#allocation4 + $0x2b0] sm:$0xff]
    %v400 = vld [vmem:[#allocation4 + $0x2b8] sm:$0xff]
    %v401 = vld [vmem:[#allocation4 + $0x2c0] sm:$0xff]
    %v402 = vld [vmem:[#allocation4 + $0x2c8] sm:$0xff]
    %v403 = vld [vmem:[#allocation4 + $0x2d0] sm:$0xff]
    %v404 = vld [vmem:[#allocation4 + $0x2d8] sm:$0xff]
    %v405 = vld [vmem:[#allocation4 + $0x2e0] sm:$0xff]
    %v406 = vld [vmem:[#allocation4 + $0x2e8] sm:$0xff]
    %v407 = vld [vmem:[#allocation4 + $0x2f0] sm:$0xff]
    %v408 = vld [vmem:[#allocation4 + $0x2f8] sm:$0xff]
    %v409 = vld [vmem:[#allocation4 + $0x300] sm:$0xff]
    %v410 = vld [vmem:[#allocation4 + $0x308] sm:$0xff]
    %v411 = vld [vmem:[#allocation4 + $0x310] sm:$0xff]
    %v412 = vld [vmem:[#allocation4 + $0x318] sm:$0xff]
    %v413 = vld [vmem:[#allocation4 + $0x320] sm:$0xff]
    %v414 = vld [vmem:[#allocation4 + $0x328] sm:$0xff]
    %v415 = vld [vmem:[#allocation4 + $0x330] sm:$0xff]
    %v416 = vld [vmem:[#allocation4 + $0x338] sm:$0xff]
    %v417 = vld [vmem:[#allocation4 + $0x340] sm:$0xff]
    %v418 = vld [vmem:[#allocation4 + $0x348] sm:$0xff]
    %v419 = vld [vmem:[#allocation4 + $0x350] sm:$0xff]
    %v420 = vld [vmem:[#allocation4 + $0x358] sm:$0xff]
    %v421 = vld [vmem:[#allocation4 + $0x360] sm:$0xff]
    %v422 = vld [vmem:[#allocation4 + $0x368] sm:$0xff]
    %v423 = vld [vmem:[#allocation4 + $0x370] sm:$0xff]
    %v424 = vld [vmem:[#allocation4 + $0x378] sm:$0xff]
    %v425 = vld [vmem:[#allocation4 + $0x380] sm:$0xff]
    %v426 = vld [vmem:[#allocation4 + $0x388] sm:$0xff]
    %v427 = vld [vmem:[#allocation4 + $0x390] sm:$0xff]
    %v428 = vld [vmem:[#allocation4 + $0x398] sm:$0xff]
    %v429 = vld [vmem:[#allocation4 + $0x3a0] sm:$0xff]
    %v430 = vld [vmem:[#allocation4 + $0x3a8] sm:$0xff]
    %v431 = vld [vmem:[#allocation4 + $0x3b0] sm:$0xff]
    %v432 = vld [vmem:[#allocation4 + $0x3b8] sm:$0xff]
    %v433 = vld [vmem:[#allocation4 + $0x3c0] sm:$0xff]
    %v434 = vld [vmem:[#allocation4 + $0x3c8] sm:$0xff]
    %v435 = vld [vmem:[#allocation4 + $0x3d0] sm:$0xff]
    %v436 = vld [vmem:[#allocation4 + $0x3d8] sm:$0xff]
    %v437 = vld [vmem:[#allocation4 + $0x3e0] sm:$0xff]
    %v438 = vld [vmem:[#allocation4 + $0x3e8] sm:$0xff]
    %v439 = vld [vmem:[#allocation4 + $0x3f0] sm:$0xff]
    %v440 = vld [vmem:[#allocation4 + $0x3f8] sm:$0xff]
    %v441 = vld [vmem:[#allocation4 + $0x400] sm:$0xff]
    %v442 = vld [vmem:[#allocation4 + $0x408] sm:$0xff]
    %v443 = vld [vmem:[#allocation4 + $0x410] sm:$0xff]
    %v444 = vld [vmem:[#allocation4 + $0x418] sm:$0xff]
    %v445 = vld [vmem:[#allocation4 + $0x420] sm:$0xff]
    %v446 = vld [vmem:[#allocation4 + $0x428] sm:$0xff]
    %v447 = vld [vmem:[#allocation4 + $0x430] sm:$0xff]
    %v448 = vld [vmem:[#allocation4 + $0x438] sm:$0xff]
    %v449 = vld [vmem:[#allocation4 + $0x440] sm:$0xff]
    %v450 = vld [vmem:[#allocation4 + $0x448] sm:$0xff]
    %v451 = vld [vmem:[#allocation4 + $0x450] sm:$0xff]
    %v452 = vld [vmem:[#allocation4 + $0x458] sm:$0xff]
    %v453 = vld [vmem:[#allocation4 + $0x460] sm:$0xff]
    %v454 = vld [vmem:[#allocation4 + $0x468] sm:$0xff]
    %v455 = vld [vmem:[#allocation4 + $0x470] sm:$0xff]
    %v456 = vld [vmem:[#allocation4 + $0x478] sm:$0xff]
    %v457 = vld [vmem:[#allocation4 + $0x480] sm:$0xff]
    %v458 = vld [vmem:[#allocation4 + $0x488] sm:$0xff]
    %v459 = vld [vmem:[#allocation4 + $0x490] sm:$0xff]
    %v460 = vld [vmem:[#allocation4 + $0x498] sm:$0xff]
    %v461 = vld [vmem:[#allocation4 + $0x4a0] sm:$0xff]
    %v462 = vld [vmem:[#allocation4 + $0x4a8] sm:$0xff]
    %v463 = vld [vmem:[#allocation4 + $0x4b0] sm:$0xff]
    %v464 = vld [vmem:[#allocation4 + $0x4b8] sm:$0xff]
    %v465 = vld [vmem:[#allocation4 + $0x4c0] sm:$0xff]
    %v466 = vld [vmem:[#allocation4 + $0x4c8] sm:$0xff]
    %v467 = vld [vmem:[#allocation4 + $0x4d0] sm:$0xff]
    %v468 = vld [vmem:[#allocation4 + $0x4d8] sm:$0xff]
    %v469 = vld [vmem:[#allocation4 + $0x4e0] sm:$0xff]
    %v470 = vld [vmem:[#allocation4 + $0x4e8] sm:$0xff]
    %v471 = vld [vmem:[#allocation4 + $0x4f0] sm:$0xff]
    %v472 = vld [vmem:[#allocation4 + $0x4f8] sm:$0xff]
    %v473 = vld [vmem:[#allocation4 + $0x500] sm:$0xff]
    %v474 = vld [vmem:[#allocation4 + $0x508] sm:$0xff]
    %v475 = vld [vmem:[#allocation4 + $0x510] sm:$0xff]
    %v476 = vld [vmem:[#allocation4 + $0x518] sm:$0xff]
    %v477 = vld [vmem:[#allocation4 + $0x520] sm:$0xff]
    %v478 = vld [vmem:[#allocation4 + $0x528] sm:$0xff]
    %v479 = vld [vmem:[#allocation4 + $0x530] sm:$0xff]
    %v480 = vld [vmem:[#allocation4 + $0x538] sm:$0xff]
    %v481 = vld [vmem:[#allocation4 + $0x540] sm:$0xff]
    %v482 = vld [vmem:[#allocation4 + $0x548] sm:$0xff]
    %v483 = vld [vmem:[#allocation4 + $0x550] sm:$0xff]
    %v484 = vld [vmem:[#allocation4 + $0x558] sm:$0xff]
    %v485 = vld [vmem:[#allocation4 + $0x560] sm:$0xff]
    %v486 = vld [vmem:[#allocation4 + $0x568] sm:$0xff]
    %v487 = vld [vmem:[#allocation4 + $0x570] sm:$0xff]
    %v488 = vld [vmem:[#allocation4 + $0x578] sm:$0xff]
    %v489 = vld [vmem:[#allocation4 + $0x580] sm:$0xff]
    %v490 = vld [vmem:[#allocation4 + $0x588] sm:$0xff]
    %v491 = vld [vmem:[#allocation4 + $0x590] sm:$0xff]
    %v492 = vld [vmem:[#allocation4 + $0x598] sm:$0xff]
    %v493 = vld [vmem:[#allocation4 + $0x5a0] sm:$0xff]
    %v494 = vld [vmem:[#allocation4 + $0x5a8] sm:$0xff]
    %v495 = vld [vmem:[#allocation4 + $0x5b0] sm:$0xff]
    %v496 = vld [vmem:[#allocation4 + $0x5b8] sm:$0xff]
    %v497 = vld [vmem:[#allocation4 + $0x5c0] sm:$0xff]
    %v498 = vld [vmem:[#allocation4 + $0x5c8] sm:$0xff]
    %v499 = vld [vmem:[#allocation4 + $0x5d0] sm:$0xff]
    %v500 = vld [vmem:[#allocation4 + $0x5d8] sm:$0xff]
    %v501 = vld [vmem:[#allocation4 + $0x5e0] sm:$0xff]
    %v502 = vld [vmem:[#allocation4 + $0x5e8] sm:$0xff]
    %v503 = vld [vmem:[#allocation4 + $0x5f0] sm:$0xff]
    %v504 = vld [vmem:[#allocation4 + $0x5f8] sm:$0xff]
    %v505 = vunpack.c.l.bf16 %v313
    %v506 = vunpack.c.h.bf16 %v313
    %v507 = vunpack.c.l.bf16 %v314
    %v508 = vunpack.c.h.bf16 %v314
    %v509 = vunpack.c.l.bf16 %v315
    %v510 = vunpack.c.h.bf16 %v315
    %v511 = vunpack.c.l.bf16 %v316
    %v512 = vunpack.c.h.bf16 %v316
    %v513 = vunpack.c.l.bf16 %v317
    %v514 = vunpack.c.h.bf16 %v317
    %v515 = vunpack.c.l.bf16 %v318
    %v516 = vunpack.c.h.bf16 %v318
    %v517 = vunpack.c.l.bf16 %v319
    %v518 = vunpack.c.h.bf16 %v319
    %v519 = vunpack.c.l.bf16 %v320
    %v520 = vunpack.c.h.bf16 %v320
    %v521 = vunpack.c.l.bf16 %v321
    %v522 = vunpack.c.h.bf16 %v321
    %v523 = vunpack.c.l.bf16 %v322
    %v524 = vunpack.c.h.bf16 %v322
    %v525 = vunpack.c.l.bf16 %v323
    %v526 = vunpack.c.h.bf16 %v323
    %v527 = vunpack.c.l.bf16 %v324
    %v528 = vunpack.c.h.bf16 %v324
    %v529 = vunpack.c.l.bf16 %v325
    %v530 = vunpack.c.h.bf16 %v325
    %v531 = vunpack.c.l.bf16 %v326
    %v532 = vunpack.c.h.bf16 %v326
    %v533 = vunpack.c.l.bf16 %v327
    %v534 = vunpack.c.h.bf16 %v327
    %v535 = vunpack.c.l.bf16 %v328
    %v536 = vunpack.c.h.bf16 %v328
    %v537 = vunpack.c.l.bf16 %v329
    %v538 = vunpack.c.h.bf16 %v329
    %v539 = vunpack.c.l.bf16 %v330
    %v540 = vunpack.c.h.bf16 %v330
    %v541 = vunpack.c.l.bf16 %v331
    %v542 = vunpack.c.h.bf16 %v331
    %v543 = vunpack.c.l.bf16 %v332
    %v544 = vunpack.c.h.bf16 %v332
    %v545 = vunpack.c.l.bf16 %v333
    %v546 = vunpack.c.h.bf16 %v333
    %v547 = vunpack.c.l.bf16 %v334
    %v548 = vunpack.c.h.bf16 %v334
    %v549 = vunpack.c.l.bf16 %v335
    %v550 = vunpack.c.h.bf16 %v335
    %v551 = vunpack.c.l.bf16 %v336
    %v552 = vunpack.c.h.bf16 %v336
    %v553 = vunpack.c.l.bf16 %v337
    %v554 = vunpack.c.h.bf16 %v337
    %v555 = vunpack.c.l.bf16 %v338
    %v556 = vunpack.c.h.bf16 %v338
    %v557 = vunpack.c.l.bf16 %v339
    %v558 = vunpack.c.h.bf16 %v339
    %v559 = vunpack.c.l.bf16 %v340
    %v560 = vunpack.c.h.bf16 %v340
    %v561 = vunpack.c.l.bf16 %v341
    %v562 = vunpack.c.h.bf16 %v341
    %v563 = vunpack.c.l.bf16 %v342
    %v564 = vunpack.c.h.bf16 %v342
    %v565 = vunpack.c.l.bf16 %v343
    %v566 = vunpack.c.h.bf16 %v343
    %v567 = vunpack.c.l.bf16 %v344
    %v568 = vunpack.c.h.bf16 %v344
    %v569 = vunpack.c.l.bf16 %v345
    %v570 = vunpack.c.h.bf16 %v345
    %v571 = vunpack.c.l.bf16 %v346
    %v572 = vunpack.c.h.bf16 %v346
    %v573 = vunpack.c.l.bf16 %v347
    %v574 = vunpack.c.h.bf16 %v347
    %v575 = vunpack.c.l.bf16 %v348
    %v576 = vunpack.c.h.bf16 %v348
    %v577 = vunpack.c.l.bf16 %v349
    %v578 = vunpack.c.h.bf16 %v349
    %v579 = vunpack.c.l.bf16 %v350
    %v580 = vunpack.c.h.bf16 %v350
    %v581 = vunpack.c.l.bf16 %v351
    %v582 = vunpack.c.h.bf16 %v351
    %v583 = vunpack.c.l.bf16 %v352
    %v584 = vunpack.c.h.bf16 %v352
    %v585 = vunpack.c.l.bf16 %v353
    %v586 = vunpack.c.h.bf16 %v353
    %v587 = vunpack.c.l.bf16 %v354
    %v588 = vunpack.c.h.bf16 %v354
    %v589 = vunpack.c.l.bf16 %v355
    %v590 = vunpack.c.h.bf16 %v355
    %v591 = vunpack.c.l.bf16 %v356
    %v592 = vunpack.c.h.bf16 %v356
    %v593 = vunpack.c.l.bf16 %v357
    %v594 = vunpack.c.h.bf16 %v357
    %v595 = vunpack.c.l.bf16 %v358
    %v596 = vunpack.c.h.bf16 %v358
    %v597 = vunpack.c.l.bf16 %v359
    %v598 = vunpack.c.h.bf16 %v359
    %v599 = vunpack.c.l.bf16 %v360
    %v600 = vunpack.c.h.bf16 %v360
    %v601 = vunpack.c.l.bf16 %v361
    %v602 = vunpack.c.h.bf16 %v361
    %v603 = vunpack.c.l.bf16 %v362
    %v604 = vunpack.c.h.bf16 %v362
    %v605 = vunpack.c.l.bf16 %v363
    %v606 = vunpack.c.h.bf16 %v363
    %v607 = vunpack.c.l.bf16 %v364
    %v608 = vunpack.c.h.bf16 %v364
    %v609 = vunpack.c.l.bf16 %v365
    %v610 = vunpack.c.h.bf16 %v365
    %v611 = vunpack.c.l.bf16 %v366
    %v612 = vunpack.c.h.bf16 %v366
    %v613 = vunpack.c.l.bf16 %v367
    %v614 = vunpack.c.h.bf16 %v367
    %v615 = vunpack.c.l.bf16 %v368
    %v616 = vunpack.c.h.bf16 %v368
    %v617 = vunpack.c.l.bf16 %v369
    %v618 = vunpack.c.h.bf16 %v369
    %v619 = vunpack.c.l.bf16 %v370
    %v620 = vunpack.c.h.bf16 %v370
    %v621 = vunpack.c.l.bf16 %v371
    %v622 = vunpack.c.h.bf16 %v371
    %v623 = vunpack.c.l.bf16 %v372
    %v624 = vunpack.c.h.bf16 %v372
    %v625 = vunpack.c.l.bf16 %v373
    %v626 = vunpack.c.h.bf16 %v373
    %v627 = vunpack.c.l.bf16 %v374
    %v628 = vunpack.c.h.bf16 %v374
    %v629 = vunpack.c.l.bf16 %v375
    %v630 = vunpack.c.h.bf16 %v375
    %v631 = vunpack.c.l.bf16 %v376
    %v632 = vunpack.c.h.bf16 %v376
    %v633 = vunpack.c.l.bf16 %v377
    %v634 = vunpack.c.h.bf16 %v377
    %v635 = vunpack.c.l.bf16 %v378
    %v636 = vunpack.c.h.bf16 %v378
    %v637 = vunpack.c.l.bf16 %v379
    %v638 = vunpack.c.h.bf16 %v379
    %v639 = vunpack.c.l.bf16 %v380
    %v640 = vunpack.c.h.bf16 %v380
    %v641 = vunpack.c.l.bf16 %v381
    %v642 = vunpack.c.h.bf16 %v381
    %v643 = vunpack.c.l.bf16 %v382
    %v644 = vunpack.c.h.bf16 %v382
    %v645 = vunpack.c.l.bf16 %v383
    %v646 = vunpack.c.h.bf16 %v383
    %v647 = vunpack.c.l.bf16 %v384
    %v648 = vunpack.c.h.bf16 %v384
    %v649 = vunpack.c.l.bf16 %v385
    %v650 = vunpack.c.h.bf16 %v385
    %v651 = vunpack.c.l.bf16 %v386
    %v652 = vunpack.c.h.bf16 %v386
    %v653 = vunpack.c.l.bf16 %v387
    %v654 = vunpack.c.h.bf16 %v387
    %v655 = vunpack.c.l.bf16 %v388
    %v656 = vunpack.c.h.bf16 %v388
    %v657 = vunpack.c.l.bf16 %v389
    %v658 = vunpack.c.h.bf16 %v389
    %v659 = vunpack.c.l.bf16 %v390
    %v660 = vunpack.c.h.bf16 %v390
    %v661 = vunpack.c.l.bf16 %v391
    %v662 = vunpack.c.h.bf16 %v391
    %v663 = vunpack.c.l.bf16 %v392
    %v664 = vunpack.c.h.bf16 %v392
    %v665 = vunpack.c.l.bf16 %v393
    %v666 = vunpack.c.h.bf16 %v393
    %v667 = vunpack.c.l.bf16 %v394
    %v668 = vunpack.c.h.bf16 %v394
    %v669 = vunpack.c.l.bf16 %v395
    %v670 = vunpack.c.h.bf16 %v395
    %v671 = vunpack.c.l.bf16 %v396
    %v672 = vunpack.c.h.bf16 %v396
    %v673 = vunpack.c.l.bf16 %v397
    %v674 = vunpack.c.h.bf16 %v397
    %v675 = vunpack.c.l.bf16 %v398
    %v676 = vunpack.c.h.bf16 %v398
    %v677 = vunpack.c.l.bf16 %v399
    %v678 = vunpack.c.h.bf16 %v399
    %v679 = vunpack.c.l.bf16 %v400
    %v680 = vunpack.c.h.bf16 %v400
    %v681 = vunpack.c.l.bf16 %v401
    %v682 = vunpack.c.h.bf16 %v401
    %v683 = vunpack.c.l.bf16 %v402
    %v684 = vunpack.c.h.bf16 %v402
    %v685 = vunpack.c.l.bf16 %v403
    %v686 = vunpack.c.h.bf16 %v403
    %v687 = vunpack.c.l.bf16 %v404
    %v688 = vunpack.c.h.bf16 %v404
    %v689 = vunpack.c.l.bf16 %v405
    %v690 = vunpack.c.h.bf16 %v405
    %v691 = vunpack.c.l.bf16 %v406
    %v692 = vunpack.c.h.bf16 %v406
    %v693 = vunpack.c.l.bf16 %v407
    %v694 = vunpack.c.h.bf16 %v407
    %v695 = vunpack.c.l.bf16 %v408
    %v696 = vunpack.c.h.bf16 %v408
    %v697 = vunpack.c.l.bf16 %v409
    %v698 = vunpack.c.h.bf16 %v409
    %v699 = vunpack.c.l.bf16 %v410
    %v700 = vunpack.c.h.bf16 %v410
    %v701 = vunpack.c.l.bf16 %v411
    %v702 = vunpack.c.h.bf16 %v411
    %v703 = vunpack.c.l.bf16 %v412
    %v704 = vunpack.c.h.bf16 %v412
    %v705 = vunpack.c.l.bf16 %v413
    %v706 = vunpack.c.h.bf16 %v413
    %v707 = vunpack.c.l.bf16 %v414
    %v708 = vunpack.c.h.bf16 %v414
    %v709 = vunpack.c.l.bf16 %v415
    %v710 = vunpack.c.h.bf16 %v415
    %v711 = vunpack.c.l.bf16 %v416
    %v712 = vunpack.c.h.bf16 %v416
    %v713 = vunpack.c.l.bf16 %v417
    %v714 = vunpack.c.h.bf16 %v417
    %v715 = vunpack.c.l.bf16 %v418
    %v716 = vunpack.c.h.bf16 %v418
    %v717 = vunpack.c.l.bf16 %v419
    %v718 = vunpack.c.h.bf16 %v419
    %v719 = vunpack.c.l.bf16 %v420
    %v720 = vunpack.c.h.bf16 %v420
    %v721 = vunpack.c.l.bf16 %v421
    %v722 = vunpack.c.h.bf16 %v421
    %v723 = vunpack.c.l.bf16 %v422
    %v724 = vunpack.c.h.bf16 %v422
    %v725 = vunpack.c.l.bf16 %v423
    %v726 = vunpack.c.h.bf16 %v423
    %v727 = vunpack.c.l.bf16 %v424
    %v728 = vunpack.c.h.bf16 %v424
    %v729 = vunpack.c.l.bf16 %v425
    %v730 = vunpack.c.h.bf16 %v425
    %v731 = vunpack.c.l.bf16 %v426
    %v732 = vunpack.c.h.bf16 %v426
    %v733 = vunpack.c.l.bf16 %v427
    %v734 = vunpack.c.h.bf16 %v427
    %v735 = vunpack.c.l.bf16 %v428
    %v736 = vunpack.c.h.bf16 %v428
    %v737 = vunpack.c.l.bf16 %v429
    %v738 = vunpack.c.h.bf16 %v429
    %v739 = vunpack.c.l.bf16 %v430
    %v740 = vunpack.c.h.bf16 %v430
    %v741 = vunpack.c.l.bf16 %v431
    %v742 = vunpack.c.h.bf16 %v431
    %v743 = vunpack.c.l.bf16 %v432
    %v744 = vunpack.c.h.bf16 %v432
    %v745 = vunpack.c.l.bf16 %v433
    %v746 = vunpack.c.h.bf16 %v433
    %v747 = vunpack.c.l.bf16 %v434
    %v748 = vunpack.c.h.bf16 %v434
    %v749 = vunpack.c.l.bf16 %v435
    %v750 = vunpack.c.h.bf16 %v435
    %v751 = vunpack.c.l.bf16 %v436
    %v752 = vunpack.c.h.bf16 %v436
    %v753 = vunpack.c.l.bf16 %v437
    %v754 = vunpack.c.h.bf16 %v437
    %v755 = vunpack.c.l.bf16 %v438
    %v756 = vunpack.c.h.bf16 %v438
    %v757 = vunpack.c.l.bf16 %v439
    %v758 = vunpack.c.h.bf16 %v439
    %v759 = vunpack.c.l.bf16 %v440
    %v760 = vunpack.c.h.bf16 %v440
    %v761 = vunpack.c.l.bf16 %v441
    %v762 = vunpack.c.h.bf16 %v441
    %v763 = vunpack.c.l.bf16 %v442
    %v764 = vunpack.c.h.bf16 %v442
    %v765 = vunpack.c.l.bf16 %v443
    %v766 = vunpack.c.h.bf16 %v443
    %v767 = vunpack.c.l.bf16 %v444
    %v768 = vunpack.c.h.bf16 %v444
    %v769 = vunpack.c.l.bf16 %v445
    %v770 = vunpack.c.h.bf16 %v445
    %v771 = vunpack.c.l.bf16 %v446
    %v772 = vunpack.c.h.bf16 %v446
    %v773 = vunpack.c.l.bf16 %v447
    %v774 = vunpack.c.h.bf16 %v447
    %v775 = vunpack.c.l.bf16 %v448
    %v776 = vunpack.c.h.bf16 %v448
    %v777 = vunpack.c.l.bf16 %v449
    %v778 = vunpack.c.h.bf16 %v449
    %v779 = vunpack.c.l.bf16 %v450
    %v780 = vunpack.c.h.bf16 %v450
    %v781 = vunpack.c.l.bf16 %v451
    %v782 = vunpack.c.h.bf16 %v451
    %v783 = vunpack.c.l.bf16 %v452
    %v784 = vunpack.c.h.bf16 %v452
    %v785 = vunpack.c.l.bf16 %v453
    %v786 = vunpack.c.h.bf16 %v453
    %v787 = vunpack.c.l.bf16 %v454
    %v788 = vunpack.c.h.bf16 %v454
    %v789 = vunpack.c.l.bf16 %v455
    %v790 = vunpack.c.h.bf16 %v455
    %v791 = vunpack.c.l.bf16 %v456
    %v792 = vunpack.c.h.bf16 %v456
    %v793 = vunpack.c.l.bf16 %v457
    %v794 = vunpack.c.h.bf16 %v457
    %v795 = vunpack.c.l.bf16 %v458
    %v796 = vunpack.c.h.bf16 %v458
    %v797 = vunpack.c.l.bf16 %v459
    %v798 = vunpack.c.h.bf16 %v459
    %v799 = vunpack.c.l.bf16 %v460
    %v800 = vunpack.c.h.bf16 %v460
    %v801 = vunpack.c.l.bf16 %v461
    %v802 = vunpack.c.h.bf16 %v461
    %v803 = vunpack.c.l.bf16 %v462
    %v804 = vunpack.c.h.bf16 %v462
    %v805 = vunpack.c.l.bf16 %v463
    %v806 = vunpack.c.h.bf16 %v463
    %v807 = vunpack.c.l.bf16 %v464
    %v808 = vunpack.c.h.bf16 %v464
    %v809 = vunpack.c.l.bf16 %v465
    %v810 = vunpack.c.h.bf16 %v465
    %v811 = vunpack.c.l.bf16 %v466
    %v812 = vunpack.c.h.bf16 %v466
    %v813 = vunpack.c.l.bf16 %v467
    %v814 = vunpack.c.h.bf16 %v467
    %v815 = vunpack.c.l.bf16 %v468
    %v816 = vunpack.c.h.bf16 %v468
    %v817 = vunpack.c.l.bf16 %v469
    %v818 = vunpack.c.h.bf16 %v469
    %v819 = vunpack.c.l.bf16 %v470
    %v820 = vunpack.c.h.bf16 %v470
    %v821 = vunpack.c.l.bf16 %v471
    %v822 = vunpack.c.h.bf16 %v471
    %v823 = vunpack.c.l.bf16 %v472
    %v824 = vunpack.c.h.bf16 %v472
    %v825 = vunpack.c.l.bf16 %v473
    %v826 = vunpack.c.h.bf16 %v473
    %v827 = vunpack.c.l.bf16 %v474
    %v828 = vunpack.c.h.bf16 %v474
    %v829 = vunpack.c.l.bf16 %v475
    %v830 = vunpack.c.h.bf16 %v475
    %v831 = vunpack.c.l.bf16 %v476
    %v832 = vunpack.c.h.bf16 %v476
    %v833 = vunpack.c.l.bf16 %v477
    %v834 = vunpack.c.h.bf16 %v477
    %v835 = vunpack.c.l.bf16 %v478
    %v836 = vunpack.c.h.bf16 %v478
    %v837 = vunpack.c.l.bf16 %v479
    %v838 = vunpack.c.h.bf16 %v479
    %v839 = vunpack.c.l.bf16 %v480
    %v840 = vunpack.c.h.bf16 %v480
    %v841 = vunpack.c.l.bf16 %v481
    %v842 = vunpack.c.h.bf16 %v481
    %v843 = vunpack.c.l.bf16 %v482
    %v844 = vunpack.c.h.bf16 %v482
    %v845 = vunpack.c.l.bf16 %v483
    %v846 = vunpack.c.h.bf16 %v483
    %v847 = vunpack.c.l.bf16 %v484
    %v848 = vunpack.c.h.bf16 %v484
    %v849 = vunpack.c.l.bf16 %v485
    %v850 = vunpack.c.h.bf16 %v485
    %v851 = vunpack.c.l.bf16 %v486
    %v852 = vunpack.c.h.bf16 %v486
    %v853 = vunpack.c.l.bf16 %v487
    %v854 = vunpack.c.h.bf16 %v487
    %v855 = vunpack.c.l.bf16 %v488
    %v856 = vunpack.c.h.bf16 %v488
    %v857 = vunpack.c.l.bf16 %v489
    %v858 = vunpack.c.h.bf16 %v489
    %v859 = vunpack.c.l.bf16 %v490
    %v860 = vunpack.c.h.bf16 %v490
    %v861 = vunpack.c.l.bf16 %v491
    %v862 = vunpack.c.h.bf16 %v491
    %v863 = vunpack.c.l.bf16 %v492
    %v864 = vunpack.c.h.bf16 %v492
    %v865 = vunpack.c.l.bf16 %v493
    %v866 = vunpack.c.h.bf16 %v493
    %v867 = vunpack.c.l.bf16 %v494
    %v868 = vunpack.c.h.bf16 %v494
    %v869 = vunpack.c.l.bf16 %v495
    %v870 = vunpack.c.h.bf16 %v495
    %v871 = vunpack.c.l.bf16 %v496
    %v872 = vunpack.c.h.bf16 %v496
    %v873 = vunpack.c.l.bf16 %v497
    %v874 = vunpack.c.h.bf16 %v497
    %v875 = vunpack.c.l.bf16 %v498
    %v876 = vunpack.c.h.bf16 %v498
    %v877 = vunpack.c.l.bf16 %v499
    %v878 = vunpack.c.h.bf16 %v499
    %v879 = vunpack.c.l.bf16 %v500
    %v880 = vunpack.c.h.bf16 %v500
    %v881 = vunpack.c.l.bf16 %v501
    %v882 = vunpack.c.h.bf16 %v501
    %v883 = vunpack.c.l.bf16 %v502
    %v884 = vunpack.c.h.bf16 %v502
    %v885 = vunpack.c.l.bf16 %v503
    %v886 = vunpack.c.h.bf16 %v503
    %v887 = vunpack.c.l.bf16 %v504
    %v888 = vunpack.c.h.bf16 %v504
    %v889 = vld [vmem:[%s4] sm:$0x3f]
    %v891 = vlaneseq
    %v892 = vshrl.u32 %v891, 7
    %v893 = vsub.s32 0, %v892
    %v894 = vrot.slane %v889, %v893
    %v895 = vlaneseq
    %v896 = vshrl.u32 %v895, 7
    %v897 = vsub.s32 1, %v896
    %v898 = vrot.slane %v889, %v897
    %v899 = vlaneseq
    %v900 = vshrl.u32 %v899, 7
    %v901 = vsub.s32 2, %v900
    %v902 = vrot.slane %v889, %v901
    %v903 = vlaneseq
    %v904 = vshrl.u32 %v903, 7
    %v905 = vsub.s32 3, %v904
    %v906 = vrot.slane %v889, %v905
    %v907 = vlaneseq
    %v908 = vshrl.u32 %v907, 7
    %v909 = vsub.s32 4, %v908
    %v910 = vrot.slane %v889, %v909
    %v911 = vlaneseq
    %v912 = vshrl.u32 %v911, 7
    %v913 = vsub.s32 5, %v912
    %v914 = vrot.slane %v889, %v913
    %921 = vmatprep.subr.mxu0 %v506
    %922 = vmatpush1.msra.mxu0 %v505
    %923 = vmatprep.subr.mxu0 %v512
    %924 = vmatpush1.msra.mxu0 %v511
    %925 = vmatprep.subr.mxu0 %v518
    %926 = vmatpush1.msra.mxu0 %v517
    %927 = vmatprep.subr.mxu0 %v524
    %928 = vmatpush1.msra.mxu0 %v523
    %929 = vmatprep.subr.mxu0 %v530
    %930 = vmatpush1.msra.mxu0 %v529
    %931 = vmatprep.subr.mxu0 %v536
    %932 = vmatpush1.msra.mxu0 %v535
    %933 = vmatprep.subr.mxu0 %v542
    %934 = vmatpush1.msra.mxu0 %v541
    %935 = vmatprep.subr.mxu0 %v548
    %936 = vmatpush1.msra.mxu0 %v547
    %937 = vmatprep.subr.mxu0 %v554
    %938 = vmatpush1.msra.mxu0 %v553
    %939 = vmatprep.subr.mxu0 %v560
    %940 = vmatpush1.msra.mxu0 %v559
    %941 = vmatprep.subr.mxu0 %v566
    %942 = vmatpush1.msra.mxu0 %v565
    %943 = vmatprep.subr.mxu0 %v572
    %944 = vmatpush1.msra.mxu0 %v571
    %945 = vmatprep.subr.mxu0 %v578
    %946 = vmatpush1.msra.mxu0 %v577
    %947 = vmatprep.subr.mxu0 %v584
    %948 = vmatpush1.msra.mxu0 %v583
    %949 = vmatprep.subr.mxu0 %v590
    %950 = vmatpush1.msra.mxu0 %v589
    %951 = vmatprep.subr.mxu0 %v596
    %952 = vmatpush1.msra.mxu0 %v595
    %953 = vmatprep.subr.mxu0 %v602
    %954 = vmatpush1.msra.mxu0 %v601
    %955 = vmatprep.subr.mxu0 %v608
    %956 = vmatpush1.msra.mxu0 %v607
    %957 = vmatprep.subr.mxu0 %v614
    %958 = vmatpush1.msra.mxu0 %v613
    %959 = vmatprep.subr.mxu0 %v620
    %960 = vmatpush1.msra.mxu0 %v619
    %961 = vmatprep.subr.mxu0 %v626
    %962 = vmatpush1.msra.mxu0 %v625
    %963 = vmatprep.subr.mxu0 %v632
    %964 = vmatpush1.msra.mxu0 %v631
    %965 = vmatprep.subr.mxu0 %v638
    %966 = vmatpush1.msra.mxu0 %v637
    %967 = vmatprep.subr.mxu0 %v644
    %968 = vmatpush1.msra.mxu0 %v643
    %969 = vmatprep.subr.mxu0 %v650
    %970 = vmatpush1.msra.mxu0 %v649
    %971 = vmatprep.subr.mxu0 %v656
    %972 = vmatpush1.msra.mxu0 %v655
    %973 = vmatprep.subr.mxu0 %v662
    %974 = vmatpush1.msra.mxu0 %v661
    %975 = vmatprep.subr.mxu0 %v668
    %976 = vmatpush1.msra.mxu0 %v667
    %977 = vmatprep.subr.mxu0 %v674
    %978 = vmatpush1.msra.mxu0 %v673
    %979 = vmatprep.subr.mxu0 %v680
    %980 = vmatpush1.msra.mxu0 %v679
    %981 = vmatprep.subr.mxu0 %v686
    %982 = vmatpush1.msra.mxu0 %v685
    %983 = vmatprep.subr.mxu0 %v692
    %984 = vmatpush1.msra.mxu0 %v691
    %985 = vmatprep.mubr.f32.mxu0 %v310
    %986 = vmatmul.mubr.f32.gmra.mrb[0].mxu0 %v309
    %v987 = vpop.f32.mrb[0].mxu0
    %v988 = vadd.f32 %v894, %v987
    %v989 = vpop.f32.mrb[0].mxu0
    %v990 = vadd.f32 %v898, %v989
    %991 = vdwg.mxu0
    %992 = vmatprep.subr.mxu0 %v698
    %993 = vmatpush1.msra.mxu0 %v697
    %994 = vmatprep.subr.mxu0 %v704
    %995 = vmatpush1.msra.mxu0 %v703
    %996 = vmatprep.subr.mxu0 %v710
    %997 = vmatpush1.msra.mxu0 %v709
    %998 = vmatprep.subr.mxu0 %v716
    %999 = vmatpush1.msra.mxu0 %v715
    %1000 = vmatprep.subr.mxu0 %v722
    %1001 = vmatpush1.msra.mxu0 %v721
    %1002 = vmatprep.subr.mxu0 %v728
    %1003 = vmatpush1.msra.mxu0 %v727
    %1004 = vmatprep.subr.mxu0 %v734
    %1005 = vmatpush1.msra.mxu0 %v733
    %1006 = vmatprep.subr.mxu0 %v740
    %1007 = vmatpush1.msra.mxu0 %v739
    %1008 = vmatprep.subr.mxu0 %v746
    %1009 = vmatpush1.msra.mxu0 %v745
    %1010 = vmatprep.subr.mxu0 %v752
    %1011 = vmatpush1.msra.mxu0 %v751
    %1012 = vmatprep.subr.mxu0 %v758
    %1013 = vmatpush1.msra.mxu0 %v757
    %1014 = vmatprep.subr.mxu0 %v764
    %1015 = vmatpush1.msra.mxu0 %v763
    %1016 = vmatprep.subr.mxu0 %v770
    %1017 = vmatpush1.msra.mxu0 %v769
    %1018 = vmatprep.subr.mxu0 %v776
    %1019 = vmatpush1.msra.mxu0 %v775
    %1020 = vmatprep.subr.mxu0 %v782
    %1021 = vmatpush1.msra.mxu0 %v781
    %1022 = vmatprep.subr.mxu0 %v788
    %1023 = vmatpush1.msra.mxu0 %v787
    %1024 = vmatprep.subr.mxu0 %v794
    %1025 = vmatpush1.msra.mxu0 %v793
    %1026 = vmatprep.subr.mxu0 %v800
    %1027 = vmatpush1.msra.mxu0 %v799
    %1028 = vmatprep.subr.mxu0 %v806
    %1029 = vmatpush1.msra.mxu0 %v805
    %1030 = vmatprep.subr.mxu0 %v812
    %1031 = vmatpush1.msra.mxu0 %v811
    %1032 = vmatprep.subr.mxu0 %v818
    %1033 = vmatpush1.msra.mxu0 %v817
    %1034 = vmatprep.subr.mxu0 %v824
    %1035 = vmatpush1.msra.mxu0 %v823
    %1036 = vmatprep.subr.mxu0 %v830
    %1037 = vmatpush1.msra.mxu0 %v829
    %1038 = vmatprep.subr.mxu0 %v836
    %1039 = vmatpush1.msra.mxu0 %v835
    %1040 = vmatprep.subr.mxu0 %v842
    %1041 = vmatpush1.msra.mxu0 %v841
    %1042 = vmatprep.subr.mxu0 %v848
    %1043 = vmatpush1.msra.mxu0 %v847
    %1044 = vmatprep.subr.mxu0 %v854
    %1045 = vmatpush1.msra.mxu0 %v853
    %1046 = vmatprep.subr.mxu0 %v860
    %1047 = vmatpush1.msra.mxu0 %v859
    %1048 = vmatprep.subr.mxu0 %v866
    %1049 = vmatpush1.msra.mxu0 %v865
    %1050 = vmatprep.subr.mxu0 %v872
    %1051 = vmatpush1.msra.mxu0 %v871
    %1052 = vmatprep.subr.mxu0 %v878
    %1053 = vmatpush1.msra.mxu0 %v877
    %1054 = vmatprep.subr.mxu0 %v884
    %1055 = vmatpush1.msra.mxu0 %v883
    %1056 = vmatprep.mubr.f32.mxu0 %v312
    %1057 = vmatmul.mubr.f32.gmra.mrb[0].mxu0 %v311
    %v1058 = vpop.f32.mrb[0].mxu0
    %v1059 = vadd.f32 %v988, %v1058
    %v1060 = vpop.f32.mrb[0].mxu0
    %v1061 = vadd.f32 %v990, %v1060
    %1062 = vdwg.mxu0
    %1063 = vmatprep.subr.mxu0 %v508
    %1064 = vmatpush1.msra.mxu0 %v507
    %1065 = vmatprep.subr.mxu0 %v514
    %1066 = vmatpush1.msra.mxu0 %v513
    %1067 = vmatprep.subr.mxu0 %v520
    %1068 = vmatpush1.msra.mxu0 %v519
    %1069 = vmatprep.subr.mxu0 %v526
    %1070 = vmatpush1.msra.mxu0 %v525
    %1071 = vmatprep.subr.mxu0 %v532
    %1072 = vmatpush1.msra.mxu0 %v531
    %1073 = vmatprep.subr.mxu0 %v538
    %1074 = vmatpush1.msra.mxu0 %v537
    %1075 = vmatprep.subr.mxu0 %v544
    %1076 = vmatpush1.msra.mxu0 %v543
    %1077 = vmatprep.subr.mxu0 %v550
    %1078 = vmatpush1.msra.mxu0 %v549
    %1079 = vmatprep.subr.mxu0 %v556
    %1080 = vmatpush1.msra.mxu0 %v555
    %1081 = vmatprep.subr.mxu0 %v562
    %1082 = vmatpush1.msra.mxu0 %v561
    %1083 = vmatprep.subr.mxu0 %v568
    %1084 = vmatpush1.msra.mxu0 %v567
    %1085 = vmatprep.subr.mxu0 %v574
    %1086 = vmatpush1.msra.mxu0 %v573
    %1087 = vmatprep.subr.mxu0 %v580
    %1088 = vmatpush1.msra.mxu0 %v579
    %1089 = vmatprep.subr.mxu0 %v586
    %1090 = vmatpush1.msra.mxu0 %v585
    %1091 = vmatprep.subr.mxu0 %v592
    %1092 = vmatpush1.msra.mxu0 %v591
    %1093 = vmatprep.subr.mxu0 %v598
    %1094 = vmatpush1.msra.mxu0 %v597
    %1095 = vmatprep.subr.mxu0 %v604
    %1096 = vmatpush1.msra.mxu0 %v603
    %1097 = vmatprep.subr.mxu0 %v610
    %1098 = vmatpush1.msra.mxu0 %v609
    %1099 = vmatprep.subr.mxu0 %v616
    %1100 = vmatpush1.msra.mxu0 %v615
    %1101 = vmatprep.subr.mxu0 %v622
    %1102 = vmatpush1.msra.mxu0 %v621
    %1103 = vmatprep.subr.mxu0 %v628
    %1104 = vmatpush1.msra.mxu0 %v627
    %1105 = vmatprep.subr.mxu0 %v634
    %1106 = vmatpush1.msra.mxu0 %v633
    %1107 = vmatprep.subr.mxu0 %v640
    %1108 = vmatpush1.msra.mxu0 %v639
    %1109 = vmatprep.subr.mxu0 %v646
    %1110 = vmatpush1.msra.mxu0 %v645
    %1111 = vmatprep.subr.mxu0 %v652
    %1112 = vmatpush1.msra.mxu0 %v651
    %1113 = vmatprep.subr.mxu0 %v658
    %1114 = vmatpush1.msra.mxu0 %v657
    %1115 = vmatprep.subr.mxu0 %v664
    %1116 = vmatpush1.msra.mxu0 %v663
    %1117 = vmatprep.subr.mxu0 %v670
    %1118 = vmatpush1.msra.mxu0 %v669
    %1119 = vmatprep.subr.mxu0 %v676
    %1120 = vmatpush1.msra.mxu0 %v675
    %1121 = vmatprep.subr.mxu0 %v682
    %1122 = vmatpush1.msra.mxu0 %v681
    %1123 = vmatprep.subr.mxu0 %v688
    %1124 = vmatpush1.msra.mxu0 %v687
    %1125 = vmatprep.subr.mxu0 %v694
    %1126 = vmatpush1.msra.mxu0 %v693
    %1127 = vmatprep.mubr.f32.mxu0 %v310
    %1128 = vmatmul.mubr.f32.gmra.mrb[0].mxu0 %v309
    %v1129 = vpop.f32.mrb[0].mxu0
    %v1130 = vadd.f32 %v902, %v1129
    %v1131 = vpop.f32.mrb[0].mxu0
    %v1132 = vadd.f32 %v906, %v1131
    %1133 = vdwg.mxu0
    %1134 = vmatprep.subr.mxu0 %v700
    %1135 = vmatpush1.msra.mxu0 %v699
    %1136 = vmatprep.subr.mxu0 %v706
    %1137 = vmatpush1.msra.mxu0 %v705
    %1138 = vmatprep.subr.mxu0 %v712
    %1139 = vmatpush1.msra.mxu0 %v711
    %1140 = vmatprep.subr.mxu0 %v718
    %1141 = vmatpush1.msra.mxu0 %v717
    %1142 = vmatprep.subr.mxu0 %v724
    %1143 = vmatpush1.msra.mxu0 %v723
    %1144 = vmatprep.subr.mxu0 %v730
    %1145 = vmatpush1.msra.mxu0 %v729
    %1146 = vmatprep.subr.mxu0 %v736
    %1147 = vmatpush1.msra.mxu0 %v735
    %1148 = vmatprep.subr.mxu0 %v742
    %1149 = vmatpush1.msra.mxu0 %v741
    %1150 = vmatprep.subr.mxu0 %v748
    %1151 = vmatpush1.msra.mxu0 %v747
    %1152 = vmatprep.subr.mxu0 %v754
    %1153 = vmatpush1.msra.mxu0 %v753
    %1154 = vmatprep.subr.mxu0 %v760
    %1155 = vmatpush1.msra.mxu0 %v759
    %1156 = vmatprep.subr.mxu0 %v766
    %1157 = vmatpush1.msra.mxu0 %v765
    %1158 = vmatprep.subr.mxu0 %v772
    %1159 = vmatpush1.msra.mxu0 %v771
    %1160 = vmatprep.subr.mxu0 %v778
    %1161 = vmatpush1.msra.mxu0 %v777
    %1162 = vmatprep.subr.mxu0 %v784
    %1163 = vmatpush1.msra.mxu0 %v783
    %1164 = vmatprep.subr.mxu0 %v790
    %1165 = vmatpush1.msra.mxu0 %v789
    %1166 = vmatprep.subr.mxu0 %v796
    %1167 = vmatpush1.msra.mxu0 %v795
    %1168 = vmatprep.subr.mxu0 %v802
    %1169 = vmatpush1.msra.mxu0 %v801
    %1170 = vmatprep.subr.mxu0 %v808
    %1171 = vmatpush1.msra.mxu0 %v807
    %1172 = vmatprep.subr.mxu0 %v814
    %1173 = vmatpush1.msra.mxu0 %v813
    %1174 = vmatprep.subr.mxu0 %v820
    %1175 = vmatpush1.msra.mxu0 %v819
    %1176 = vmatprep.subr.mxu0 %v826
    %1177 = vmatpush1.msra.mxu0 %v825
    %1178 = vmatprep.subr.mxu0 %v832
    %1179 = vmatpush1.msra.mxu0 %v831
    %1180 = vmatprep.subr.mxu0 %v838
    %1181 = vmatpush1.msra.mxu0 %v837
    %1182 = vmatprep.subr.mxu0 %v844
    %1183 = vmatpush1.msra.mxu0 %v843
    %1184 = vmatprep.subr.mxu0 %v850
    %1185 = vmatpush1.msra.mxu0 %v849
    %1186 = vmatprep.subr.mxu0 %v856
    %1187 = vmatpush1.msra.mxu0 %v855
    %1188 = vmatprep.subr.mxu0 %v862
    %1189 = vmatpush1.msra.mxu0 %v861
    %1190 = vmatprep.subr.mxu0 %v868
    %1191 = vmatpush1.msra.mxu0 %v867
    %1192 = vmatprep.subr.mxu0 %v874
    %1193 = vmatpush1.msra.mxu0 %v873
    %1194 = vmatprep.subr.mxu0 %v880
    %1195 = vmatpush1.msra.mxu0 %v879
    %1196 = vmatprep.subr.mxu0 %v886
    %1197 = vmatpush1.msra.mxu0 %v885
    %1198 = vmatprep.mubr.f32.mxu0 %v312
    %1199 = vmatmul.mubr.f32.gmra.mrb[0].mxu0 %v311
    %v1200 = vpop.f32.mrb[0].mxu0
    %v1201 = vadd.f32 %v1130, %v1200
    %v1202 = vpop.f32.mrb[0].mxu0
    %v1203 = vadd.f32 %v1132, %v1202
    %1204 = vdwg.mxu0
    %1205 = vmatprep.subr.mxu0 %v510
    %1206 = vmatpush1.msra.mxu0 %v509
    %1207 = vmatprep.subr.mxu0 %v516
    %1208 = vmatpush1.msra.mxu0 %v515
    %1209 = vmatprep.subr.mxu0 %v522
    %1210 = vmatpush1.msra.mxu0 %v521
    %1211 = vmatprep.subr.mxu0 %v528
    %1212 = vmatpush1.msra.mxu0 %v527
    %1213 = vmatprep.subr.mxu0 %v534
    %1214 = vmatpush1.msra.mxu0 %v533
    %1215 = vmatprep.subr.mxu0 %v540
    %1216 = vmatpush1.msra.mxu0 %v539
    %1217 = vmatprep.subr.mxu0 %v546
    %1218 = vmatpush1.msra.mxu0 %v545
    %1219 = vmatprep.subr.mxu0 %v552
    %1220 = vmatpush1.msra.mxu0 %v551
    %1221 = vmatprep.subr.mxu0 %v558
    %1222 = vmatpush1.msra.mxu0 %v557
    %1223 = vmatprep.subr.mxu0 %v564
    %1224 = vmatpush1.msra.mxu0 %v563
    %1225 = vmatprep.subr.mxu0 %v570
    %1226 = vmatpush1.msra.mxu0 %v569
    %1227 = vmatprep.subr.mxu0 %v576
    %1228 = vmatpush1.msra.mxu0 %v575
    %1229 = vmatprep.subr.mxu0 %v582
    %1230 = vmatpush1.msra.mxu0 %v581
    %1231 = vmatprep.subr.mxu0 %v588
    %1232 = vmatpush1.msra.mxu0 %v587
    %1233 = vmatprep.subr.mxu0 %v594
    %1234 = vmatpush1.msra.mxu0 %v593
    %1235 = vmatprep.subr.mxu0 %v600
    %1236 = vmatpush1.msra.mxu0 %v599
    %1237 = vmatprep.subr.mxu0 %v606
    %1238 = vmatpush1.msra.mxu0 %v605
    %1239 = vmatprep.subr.mxu0 %v612
    %1240 = vmatpush1.msra.mxu0 %v611
    %1241 = vmatprep.subr.mxu0 %v618
    %1242 = vmatpush1.msra.mxu0 %v617
    %1243 = vmatprep.subr.mxu0 %v624
    %1244 = vmatpush1.msra.mxu0 %v623
    %1245 = vmatprep.subr.mxu0 %v630
    %1246 = vmatpush1.msra.mxu0 %v629
    %1247 = vmatprep.subr.mxu0 %v636
    %1248 = vmatpush1.msra.mxu0 %v635
    %1249 = vmatprep.subr.mxu0 %v642
    %1250 = vmatpush1.msra.mxu0 %v641
    %1251 = vmatprep.subr.mxu0 %v648
    %1252 = vmatpush1.msra.mxu0 %v647
    %1253 = vmatprep.subr.mxu0 %v654
    %1254 = vmatpush1.msra.mxu0 %v653
    %1255 = vmatprep.subr.mxu0 %v660
    %1256 = vmatpush1.msra.mxu0 %v659
    %1257 = vmatprep.subr.mxu0 %v666
    %1258 = vmatpush1.msra.mxu0 %v665
    %1259 = vmatprep.subr.mxu0 %v672
    %1260 = vmatpush1.msra.mxu0 %v671
    %1261 = vmatprep.subr.mxu0 %v678
    %1262 = vmatpush1.msra.mxu0 %v677
    %1263 = vmatprep.subr.mxu0 %v684
    %1264 = vmatpush1.msra.mxu0 %v683
    %1265 = vmatprep.subr.mxu0 %v690
    %1266 = vmatpush1.msra.mxu0 %v689
    %1267 = vmatprep.subr.mxu0 %v696
    %1268 = vmatpush1.msra.mxu0 %v695
    %1269 = vmatprep.mubr.f32.mxu0 %v310
    %1270 = vmatmul.mubr.f32.gmra.mrb[0].mxu0 %v309
    %v1271 = vpop.f32.mrb[0].mxu0
    %v1272 = vadd.f32 %v910, %v1271
    %v1273 = vpop.f32.mrb[0].mxu0
    %v1274 = vadd.f32 %v914, %v1273
    %1275 = vdwg.mxu0
    %1276 = vmatprep.subr.mxu0 %v702
    %1277 = vmatpush1.msra.mxu0 %v701
    %1278 = vmatprep.subr.mxu0 %v708
    %1279 = vmatpush1.msra.mxu0 %v707
    %1280 = vmatprep.subr.mxu0 %v714
    %1281 = vmatpush1.msra.mxu0 %v713
    %1282 = vmatprep.subr.mxu0 %v720
    %1283 = vmatpush1.msra.mxu0 %v719
    %1284 = vmatprep.subr.mxu0 %v726
    %1285 = vmatpush1.msra.mxu0 %v725
    %1286 = vmatprep.subr.mxu0 %v732
    %1287 = vmatpush1.msra.mxu0 %v731
    %1288 = vmatprep.subr.mxu0 %v738
    %1289 = vmatpush1.msra.mxu0 %v737
    %1290 = vmatprep.subr.mxu0 %v744
    %1291 = vmatpush1.msra.mxu0 %v743
    %1292 = vmatprep.subr.mxu0 %v750
    %1293 = vmatpush1.msra.mxu0 %v749
    %1294 = vmatprep.subr.mxu0 %v756
    %1295 = vmatpush1.msra.mxu0 %v755
    %1296 = vmatprep.subr.mxu0 %v762
    %1297 = vmatpush1.msra.mxu0 %v761
    %1298 = vmatprep.subr.mxu0 %v768
    %1299 = vmatpush1.msra.mxu0 %v767
    %1300 = vmatprep.subr.mxu0 %v774
    %1301 = vmatpush1.msra.mxu0 %v773
    %1302 = vmatprep.subr.mxu0 %v780
    %1303 = vmatpush1.msra.mxu0 %v779
    %1304 = vmatprep.subr.mxu0 %v786
    %1305 = vmatpush1.msra.mxu0 %v785
    %1306 = vmatprep.subr.mxu0 %v792
    %1307 = vmatpush1.msra.mxu0 %v791
    %1308 = vmatprep.subr.mxu0 %v798
    %1309 = vmatpush1.msra.mxu0 %v797
    %1310 = vmatprep.subr.mxu0 %v804
    %1311 = vmatpush1.msra.mxu0 %v803
    %1312 = vmatprep.subr.mxu0 %v810
    %1313 = vmatpush1.msra.mxu0 %v809
    %1314 = vmatprep.subr.mxu0 %v816
    %1315 = vmatpush1.msra.mxu0 %v815
    %1316 = vmatprep.subr.mxu0 %v822
    %1317 = vmatpush1.msra.mxu0 %v821
    %1318 = vmatprep.subr.mxu0 %v828
    %1319 = vmatpush1.msra.mxu0 %v827
    %1320 = vmatprep.subr.mxu0 %v834
    %1321 = vmatpush1.msra.mxu0 %v833
    %1322 = vmatprep.subr.mxu0 %v840
    %1323 = vmatpush1.msra.mxu0 %v839
    %1324 = vmatprep.subr.mxu0 %v846
    %1325 = vmatpush1.msra.mxu0 %v845
    %1326 = vmatprep.subr.mxu0 %v852
    %1327 = vmatpush1.msra.mxu0 %v851
    %1328 = vmatprep.subr.mxu0 %v858
    %1329 = vmatpush1.msra.mxu0 %v857
    %1330 = vmatprep.subr.mxu0 %v864
    %1331 = vmatpush1.msra.mxu0 %v863
    %1332 = vmatprep.subr.mxu0 %v870
    %1333 = vmatpush1.msra.mxu0 %v869
    %1334 = vmatprep.subr.mxu0 %v876
    %1335 = vmatpush1.msra.mxu0 %v875
    %1336 = vmatprep.subr.mxu0 %v882
    %1337 = vmatpush1.msra.mxu0 %v881
    %1338 = vmatprep.subr.mxu0 %v888
    %1339 = vmatpush1.msra.mxu0 %v887
    %1340 = vmatprep.mubr.f32.mxu0 %v312
    %1341 = vmatmul.mubr.f32.gmra.mrb[0].mxu0 %v311
    %v1342 = vpop.f32.mrb[0].mxu0
    %v1343 = vadd.f32 %v1272, %v1342
    %v1344 = vpop.f32.mrb[0].mxu0
    %v1345 = vadd.f32 %v1274, %v1344
    %1346 = vdwg.mxu0
    %v1347 = vlaneseq
    %v1348 = vand.u32 %v1347, 127
    %v1349 = vadd.s32 %v1348, 128
    %v1350 = vadd.s32 %v1348, 256
    %v1351 = vadd.s32 %v1348, 384
    %v1352 = vadd.s32 %v1348, 512
    %v1353 = vadd.s32 %v1348, 640
    %vm1354 = vcmp.ge.s32.totalorder %v1348, 384
    %vm1355 = vcmp.ge.s32.totalorder %v1349, 384
    %vm1356 = vcmp.ge.s32.totalorder %v1350, 384
    %vm1357 = vcmp.ge.s32.totalorder %v1351, 384
    %vm1358 = vcmp.ge.s32.totalorder %v1352, 384
    %vm1359 = vcmp.ge.s32.totalorder %v1353, 384
    %v1360 = vtanh.pop %v1059
    %v1361 = vtanh.pop %v1061
    %v1362 = vtanh.pop %v1201
    %v1363 = vtanh.pop %v1203
    %v1364 = vtanh.pop %v1343
    %v1365 = vtanh.pop %v1345
    %v1366 = vsel %vm1354, %v1360, %v1059
    %v1367 = vsel %vm1355, %v1361, %v1061
    %v1368 = vsel %vm1356, %v1362, %v1201
    %v1369 = vsel %vm1357, %v1363, %v1203
    %v1370 = vsel %vm1358, %v1364, %v1343
    %v1371 = vsel %vm1359, %v1365, %v1345
    %1372 = vst [vmem:[%s5] sm:$0xff] %v1366
    %1373 = vst [vmem:[%s5 + $0x8] sm:$0xff] %v1367
    %1374 = vst [vmem:[%s5 + $0x10] sm:$0xff] %v1368
    %1375 = vst [vmem:[%s5 + $0x18] sm:$0xff] %v1369
    %1376 = vst [vmem:[%s5 + $0x20] sm:$0xff] %v1370
    %1377 = vst [vmem:[%s5 + $0x28] sm:$0xff] %v1371
    // Predicated region
    $region30: #{decoder_forward.1} parent=1 // pred_check
      _
    $region31: #{decoder_forward.1} parent=1 // pred_check_branch
      %1379 = sbr.rel (0) target = $region33
    $region32: #{decoder_forward.1} parent=1 // pred_region
      _
    $region33: #{decoder_forward.1} parent=1 // pred_fallthru
      _
    // Predicated region
    $region34: #{decoder_forward.1} parent=1 // pred_check
      _
    $region35: #{decoder_forward.1} parent=1 // pred_check_branch
      %1381 = sbr.rel (0) target = $region37
    $region36: #{decoder_forward.1} parent=1 // pred_region
      _
    $region37: #{decoder_forward.1} parent=1 // pred_fallthru
      _
    %1382 = vsyncpa [#allocation3], 1
    %1383 = vsyncpa [#allocation5], 1

</llo_original>
